<compile_context>
chip_gen: v7x
topology: tpu7x:2x2x1
jax: 0.10.0
libtpu: 0.0.40
codegen_flags: <defaults>
</compile_context>

<pallas_src>
import math

import jax
import jax.numpy as jnp
from jax.experimental import pallas as pl
from jax.experimental.pallas import tpu as pltpu


# ----------------------------- Pallas kernel ------------------------------- #

def _ac_critic_mlp_kernel(x_ref, w1_ref, b1_ref, w2_ref, b2_ref,
                          w3_ref, b3_ref, o_ref):
    """3-layer MLP on a (features, TR) tile: relu(fc1) -> relu(fc2) -> fc3.

    x_ref : (obs_dim, TR)   current row tile, rows on the lane axis
    w1_ref: (H, obs_dim)    fc1 weight restricted to the obs features
    b1_ref: (H, TR)         per-column fc1 bias with the agent one-hot folded in
    w2_ref: (H, H), b2_ref: (H, 1)
    w3_ref: (out, H), b3_ref: (out, 1)
    o_ref : (out, TR)       lane-dense output tile
    """
    x = x_ref[...]
    h1 = jnp.dot(w1_ref[...], x, preferred_element_type=jnp.float32) + b1_ref[...]
    h1 = jnp.maximum(h1, 0.0)
    h2 = jnp.dot(w2_ref[...], h1, preferred_element_type=jnp.float32) + b2_ref[...]
    h2 = jnp.maximum(h2, 0.0)
    q = jnp.dot(w3_ref[...], h2, preferred_element_type=jnp.float32) + b3_ref[...]
    o_ref[...] = q.astype(o_ref.dtype)


def _choose_row_tile(n_agents, n_rows, target=512):
    """Row-tile size: multiple of 128 (lane constraint for tiled blocks) and of
    n_agents (so the agent-id bias pattern is identical in every tile)."""
    base = (128 * n_agents) // math.gcd(128, n_agents)     # lcm(128, n)
    tr = max(base, (target // base) * base)                 # ~target, multiple of base
    needed = ((n_rows + base - 1) // base) * base            # don't over-pad tiny inputs
    return min(tr, needed)


# ----------------------------- Module wrapper ------------------------------ #

def init_ac_critic_params(key, input_shape, hidden_dim, out_dim):
    """nn.Linear-style init (uniform +/- 1/sqrt(fan_in)), PyTorch (out, in) layout."""
    ks = jax.random.split(key, 6)

    def lin(kw, kb, fan_in, fan_out):
        bound = 1.0 / jnp.sqrt(jnp.float32(fan_in))
        w = jax.random.uniform(kw, (fan_out, fan_in), jnp.float32, -bound, bound)
        b = jax.random.uniform(kb, (fan_out,), jnp.float32, -bound, bound)
        return w, b

    w1, b1 = lin(ks[0], ks[1], input_shape, hidden_dim)
    w2, b2 = lin(ks[2], ks[3], hidden_dim, hidden_dim)
    w3, b3 = lin(ks[4], ks[5], hidden_dim, out_dim)
    return (w1, b1, w2, b2, w3, b3)


def ac_critic_forward(obs, n_agents, params, *, block_rows=512):
    """obs: (bs, max_t, n, obs_dim) f32.  Returns q: (bs, max_t, n, out_dim) f32."""
    w1, b1, w2, b2, w3, b3 = params
    bs, max_t, n, obs_dim = obs.shape
    assert n == n_agents
    H = w1.shape[0]
    out_dim = w3.shape[0]
    assert w1.shape[1] == obs_dim + n, "fc1 expects obs_dim + n inputs"

    # Fold the one-hot agent-id block of fc1 into a per-agent bias (exact):
    #   fc1([obs, onehot(a)]) = W1[:, :obs_dim] @ obs + (b1 + W1[:, obs_dim + a])
    w1_obs = w1[:, :obs_dim]                        # (H, obs_dim)
    b1_eff = b1[:, None] + w1[:, obs_dim:]          # (H, n)

    R = bs * max_t * n
    TR = _choose_row_tile(n, R, target=block_rows)
    R_pad = ((R + TR - 1) // TR) * TR
    n_tiles = R_pad // TR

    # (bs, max_t, n, obs_dim) -> (R, obs_dim) -> rows on lanes: (obs_dim, R_pad)
    x_t = obs.reshape(R, obs_dim).T
    x_t = jnp.pad(x_t, ((0, 0), (0, R_pad - R)))

    # Column c of any tile corresponds to global row i*TR + c, whose agent id is
    # (i*TR + c) % n == c % n  (TR is a multiple of n) -> one resident bias tile.
    b1_tile = jnp.tile(b1_eff, (1, TR // n))        # (H, TR)
    b2_col = b2[:, None]                            # (H, 1)
    b3_col = b3[:, None]                            # (out_dim, 1)

    flops = 2 * R_pad * (obs_dim * H + H * H + H * out_dim)
    bytes_accessed = 4 * (R_pad * obs_dim + R_pad * out_dim
                          + H * obs_dim + H * TR + H * H + H
                          + out_dim * H + out_dim)

    q_t = pl.pallas_call(
        _ac_critic_mlp_kernel,
        out_shape=jax.ShapeDtypeStruct((out_dim, R_pad), jnp.float32),
        grid=(n_tiles,),
        in_specs=[
            pl.BlockSpec((obs_dim, TR), lambda i: (0, i)),    # streamed row tiles
            pl.BlockSpec((H, obs_dim), lambda i: (0, 0)),     # resident weights/biases
            pl.BlockSpec((H, TR), lambda i: (0, 0)),
            pl.BlockSpec((H, H), lambda i: (0, 0)),
            pl.BlockSpec((H, 1), lambda i: (0, 0)),
            pl.BlockSpec((out_dim, H), lambda i: (0, 0)),
            pl.BlockSpec((out_dim, 1), lambda i: (0, 0)),
        ],
        out_specs=pl.BlockSpec((out_dim, TR), lambda i: (0, i)),
        compiler_params=pltpu.CompilerParams(
            dimension_semantics=("parallel",),
            vmem_limit_bytes=32 * 1024 * 1024),
        cost_estimate=pl.CostEstimate(flops=flops, transcendentals=0,
                                      bytes_accessed=bytes_accessed),
    )(x_t, w1_obs, b1_tile, w2, b2_col, w3, b3_col)

    q = q_t[:, :R].T.reshape(bs, max_t, n, out_dim)
    return q


# --------------------------------- Demo ------------------------------------ #

if __name__ == "__main__":
    # bs=2, max_t=8, n=4 agents, obs vshape=12 -> fc1 input_shape = 12 + 4 = 16
    # hidden_dim=32, bids_as_actions=False -> fc3 outputs 1 (value head).
    bs, max_t, n, obs_dim, hidden_dim, out_dim = 2, 8, 4, 12, 32, 1
    input_shape = obs_dim + n

    key = jax.random.PRNGKey(0)
    k_obs, k_par, k_obs2 = jax.random.split(key, 3)
    params = init_ac_critic_params(k_par, input_shape, hidden_dim, out_dim)

    fwd = jax.jit(lambda o, p: ac_critic_forward(o, n, p))

    def reference(obs_, params_):
        """Pure-JAX reference reproducing the PyTorch module exactly (with concat)."""
        w1, b1, w2, b2, w3, b3 = params_
        b_, t_, na, _ = obs_.shape
        eye = jnp.broadcast_to(jnp.eye(na, dtype=obs_.dtype)[None, None],
                               (b_, t_, na, na))
        x = jnp.concatenate([obs_, eye], axis=-1)
        hp = jax.lax.Precision.HIGHEST
        h = jnp.maximum(jnp.dot(x, w1.T, precision=hp) + b1, 0.0)
        h = jnp.maximum(jnp.dot(h, w2.T, precision=hp) + b2, 0.0)
        return jnp.dot(h, w3.T, precision=hp) + b3

    # Small shape (single row tile).
    obs = jax.random.normal(k_obs, (bs, max_t, n, obs_dim), dtype=jnp.float32)
    q = jax.block_until_ready(fwd(obs, params))
    assert q.shape == (bs, max_t, n, out_dim)
    assert jnp.allclose(q, reference(obs, params), atol=1e-4, rtol=1e-4)

    # Larger shape exercising the multi-tile parallel grid:
    # R = 8*32*4 = 1024 rows -> two 512-row tiles.
    obs2 = jax.random.normal(k_obs2, (8, 32, n, obs_dim), dtype=jnp.float32)
    q2 = jax.block_until_ready(fwd(obs2, params))
    assert q2.shape == (8, 32, n, out_dim)
    assert jnp.allclose(q2, reference(obs2, params), atol=1e-4, rtol=1e-4)

    print("KERNEL_OK")
</pallas_src>

<mosaic_0001>
module attributes {stable_mosaic.version = 11 : i64} {
  func.func @_ac_critic_mlp_kernel(%arg0: i32, %arg1: memref<12x128xf32, #tpu.memory_space<vmem>>, %arg2: memref<32x12xf32, #tpu.memory_space<vmem>>, %arg3: memref<32x128xf32, #tpu.memory_space<vmem>>, %arg4: memref<32x32xf32, #tpu.memory_space<vmem>>, %arg5: memref<32x1xf32, #tpu.memory_space<vmem>>, %arg6: memref<1x32xf32, #tpu.memory_space<vmem>>, %arg7: memref<1x1xf32, #tpu.memory_space<vmem>>, %arg8: memref<1x128xf32, #tpu.memory_space<vmem>>) attributes {dimension_semantics = [#tpu.dimension_semantics<parallel>], iteration_bounds = array<i64: 1>, scalar_prefetch = 0 : i64, scratch_operands = 0 : i64, tpu.core_type = #tpu.core_type<tc>, window_params = [{transform_indices = @transform_0, window_bounds = array<i64: 12, 128>}, {pipeline_mode = #tpu.pipeline_mode<synchronous>, transform_indices = @transform_1, window_bounds = array<i64: 32, 12>}, {pipeline_mode = #tpu.pipeline_mode<synchronous>, transform_indices = @transform_2, window_bounds = array<i64: 32, 128>}, {pipeline_mode = #tpu.pipeline_mode<synchronous>, transform_indices = @transform_3, window_bounds = array<i64: 32, 32>}, {pipeline_mode = #tpu.pipeline_mode<synchronous>, transform_indices = @transform_4, window_bounds = array<i64: 32, 1>}, {pipeline_mode = #tpu.pipeline_mode<synchronous>, transform_indices = @transform_5, window_bounds = array<i64: 1, 32>}, {pipeline_mode = #tpu.pipeline_mode<synchronous>, transform_indices = @transform_6, window_bounds = array<i64: 1, 1>}, {transform_indices = @transform_7, window_bounds = array<i64: 1, 128>}]} {
    %c0 = arith.constant 0 : index
    %c0_0 = arith.constant 0 : index
    %0 = vector.load %arg1[%c0, %c0_0] : memref<12x128xf32, #tpu.memory_space<vmem>>, vector<12x128xf32>
    %c0_1 = arith.constant 0 : index
    %c0_2 = arith.constant 0 : index
    %1 = vector.load %arg2[%c0_1, %c0_2] : memref<32x12xf32, #tpu.memory_space<vmem>>, vector<32x12xf32>
    %cst = arith.constant dense<0.000000e+00> : vector<32x128xf32>
    %2 = tpu.matmul %1, %0, %cst {dimension_numbers = #tpu.dot_dimension_numbers<[1], [0], [0], [1], [0, 0, 1, 1], [], []>} : vector<32x12xf32>, vector<12x128xf32>, vector<32x128xf32> -> vector<32x128xf32>
    %c0_3 = arith.constant 0 : index
    %c0_4 = arith.constant 0 : index
    %3 = vector.load %arg3[%c0_3, %c0_4] : memref<32x128xf32, #tpu.memory_space<vmem>>, vector<32x128xf32>
    %4 = arith.addf %2, %3 : vector<32x128xf32>
    %cst_5 = arith.constant 0.000000e+00 : f32
    %5 = vector.broadcast %cst_5 : f32 to vector<32x128xf32>
    %6 = arith.maximumf %4, %5 : vector<32x128xf32>
    %c0_6 = arith.constant 0 : index
    %c0_7 = arith.constant 0 : index
    %7 = vector.load %arg4[%c0_6, %c0_7] : memref<32x32xf32, #tpu.memory_space<vmem>>, vector<32x32xf32>
    %cst_8 = arith.constant dense<0.000000e+00> : vector<32x128xf32>
    %8 = tpu.matmul %7, %6, %cst_8 {dimension_numbers = #tpu.dot_dimension_numbers<[1], [0], [0], [1], [0, 0, 1, 1], [], []>} : vector<32x32xf32>, vector<32x128xf32>, vector<32x128xf32> -> vector<32x128xf32>
    %c0_9 = arith.constant 0 : index
    %c0_10 = arith.constant 0 : index
    %9 = vector.load %arg5[%c0_9, %c0_10] : memref<32x1xf32, #tpu.memory_space<vmem>>, vector<32x1xf32>
    %10 = vector.broadcast %9 : vector<32x1xf32> to vector<32x128xf32>
    %11 = arith.addf %8, %10 : vector<32x128xf32>
    %cst_11 = arith.constant 0.000000e+00 : f32
    %12 = vector.broadcast %cst_11 : f32 to vector<32x128xf32>
    %13 = arith.maximumf %11, %12 : vector<32x128xf32>
    %c0_12 = arith.constant 0 : index
    %c0_13 = arith.constant 0 : index
    %14 = vector.load %arg6[%c0_12, %c0_13] : memref<1x32xf32, #tpu.memory_space<vmem>>, vector<1x32xf32>
    %cst_14 = arith.constant dense<0.000000e+00> : vector<1x128xf32>
    %15 = tpu.matmul %14, %13, %cst_14 {dimension_numbers = #tpu.dot_dimension_numbers<[1], [0], [0], [1], [0, 0, 1, 1], [], []>} : vector<1x32xf32>, vector<32x128xf32>, vector<1x128xf32> -> vector<1x128xf32>
    %c0_15 = arith.constant 0 : index
    %c0_16 = arith.constant 0 : index
    %16 = vector.load %arg7[%c0_15, %c0_16] : memref<1x1xf32, #tpu.memory_space<vmem>>, vector<1x1xf32>
    %17 = vector.broadcast %16 : vector<1x1xf32> to vector<1x128xf32>
    %18 = arith.addf %15, %17 : vector<1x128xf32>
    %c0_17 = arith.constant 0 : index
    %c0_18 = arith.constant 0 : index
    %19 = vector.load %arg8[%c0_17, %c0_18] : memref<1x128xf32, #tpu.memory_space<vmem>>, vector<1x128xf32>
    tpu.vector_store %arg8[%c0_17, %c0_18], %18 {strides = array<i32>} : memref<1x128xf32, #tpu.memory_space<vmem>>, vector<1x128xf32>,
    return
  }
  func.func @transform_0(%arg0: i32) -> (i32, i32) {
    %c0_i32 = arith.constant 0 : i32
    %c0_i32_0 = arith.constant 0 : i32
    return %c0_i32, %arg0 : i32, i32
  }
  func.func @transform_1(%arg0: i32) -> (i32, i32) {
    %c0_i32 = arith.constant 0 : i32
    %c0_i32_0 = arith.constant 0 : i32
    %c0_i32_1 = arith.constant 0 : i32
    return %c0_i32, %c0_i32_0 : i32, i32
  }
  func.func @transform_2(%arg0: i32) -> (i32, i32) {
    %c0_i32 = arith.constant 0 : i32
    %c0_i32_0 = arith.constant 0 : i32
    %c0_i32_1 = arith.constant 0 : i32
    return %c0_i32, %c0_i32_0 : i32, i32
  }
  func.func @transform_3(%arg0: i32) -> (i32, i32) {
    %c0_i32 = arith.constant 0 : i32
    %c0_i32_0 = arith.constant 0 : i32
    %c0_i32_1 = arith.constant 0 : i32
    return %c0_i32, %c0_i32_0 : i32, i32
  }
  func.func @transform_4(%arg0: i32) -> (i32, i32) {
    %c0_i32 = arith.constant 0 : i32
    %c0_i32_0 = arith.constant 0 : i32
    %c0_i32_1 = arith.constant 0 : i32
    return %c0_i32, %c0_i32_0 : i32, i32
  }
  func.func @transform_5(%arg0: i32) -> (i32, i32) {
    %c0_i32 = arith.constant 0 : i32
    %c0_i32_0 = arith.constant 0 : i32
    %c0_i32_1 = arith.constant 0 : i32
    return %c0_i32, %c0_i32_0 : i32, i32
  }
  func.func @transform_6(%arg0: i32) -> (i32, i32) {
    %c0_i32 = arith.constant 0 : i32
    %c0_i32_0 = arith.constant 0 : i32
    %c0_i32_1 = arith.constant 0 : i32
    return %c0_i32, %c0_i32_0 : i32, i32
  }
  func.func @transform_7(%arg0: i32) -> (i32, i32) {
    %c0_i32 = arith.constant 0 : i32
    %c0_i32_0 = arith.constant 0 : i32
    return %c0_i32, %arg0 : i32, i32
  }
}

</mosaic_0001>

<llo_original>
// kernel: _lambda_.1
$region0: #{_lambda_.1}
  #allocation0 [shape = 'u32[]', space=smem, size = 0x4, offset = 0x4, fixed_abs, tag = 'smem constant byte address 0x4 - core index']
  #allocation1 [shape = 'u32[144,128]{1,0:T(1,128)}', space=vmem, size = 0x12000, scoped, tag = 'internal scratch']
  #allocation2 [shape = 'f32[1,1]{1,0:T(1,128)S(1)}', space=vmem, size = 0x200, scoped, tag = 'scoped memory for _lambda_.1']
  %s0 = inlined_call_operand.vmem [shape: f32[12,128], index: 0, kind: input, shape index: {}]
  %s1 = inlined_call_operand.vmem [shape: f32[32,12], index: 1, kind: input, shape index: {}]
  %s2 = inlined_call_operand.vmem [shape: f32[32,128], index: 2, kind: input, shape index: {}]
  %s3 = inlined_call_operand.vmem [shape: f32[32,32], index: 3, kind: input, shape index: {}]
  %s4 = inlined_call_operand.vmem [shape: f32[32,1], index: 4, kind: input, shape index: {}]
  %s5 = inlined_call_operand.vmem [shape: f32[1,32], index: 5, kind: input, shape index: {}]
  %s6 = inlined_call_operand.<no memory space> [shape: f32[1,1], index: 6, kind: input, shape index: {}]
  %s7 = inlined_call_operand.vmem [shape: f32[1,128], index: 7, kind: output, shape index: {}]
  %s8 = sld [smem:[#allocation0]]
  $region38: #{_lambda_.1} parent=0
    _
  %s10 = ssub.s32 1, %s8
  %s11 = scalar_select 0, %s10, %s8
  %v12 = vstv %s6
  %13 = vst [vmem:[#allocation2] sm:$0x1] %v12
  // Predicated region
  $region2: #{_lambda_.1} parent=0 // pred_check
    _
  $region3: #{_lambda_.1} parent=0 // pred_check_branch
    %15 = sbr.rel (0) target = $region5
  $region4: #{_lambda_.1} parent=0 // pred_region
    _
  $region5: #{_lambda_.1} parent=0 // pred_fallthru
    _
  // Predicated region
  $region6: #{_lambda_.1} parent=0 // pred_check
    _
  $region7: #{_lambda_.1} parent=0 // pred_check_branch
    %17 = sbr.rel (0) target = $region9
  $region8: #{_lambda_.1} parent=0 // pred_region
    _
  $region9: #{_lambda_.1} parent=0 // pred_fallthru
    _
  // Predicated region
  $region10: #{_lambda_.1} parent=0 // pred_check
    _
  $region11: #{_lambda_.1} parent=0 // pred_check_branch
    %19 = sbr.rel (0) target = $region13
  $region12: #{_lambda_.1} parent=0 // pred_region
    _
  $region13: #{_lambda_.1} parent=0 // pred_fallthru
    _
  // Predicated region
  $region14: #{_lambda_.1} parent=0 // pred_check
    _
  $region15: #{_lambda_.1} parent=0 // pred_check_branch
    %21 = sbr.rel (0) target = $region17
  $region16: #{_lambda_.1} parent=0 // pred_region
    _
  $region17: #{_lambda_.1} parent=0 // pred_fallthru
    _
  // Predicated region
  $region18: #{_lambda_.1} parent=0 // pred_check
    _
  $region19: #{_lambda_.1} parent=0 // pred_check_branch
    %23 = sbr.rel (0) target = $region21
  $region20: #{_lambda_.1} parent=0 // pred_region
    _
  $region21: #{_lambda_.1} parent=0 // pred_fallthru
    _
  // Predicated region
  $region22: #{_lambda_.1} parent=0 // pred_check
    _
  $region23: #{_lambda_.1} parent=0 // pred_check_branch
    %25 = sbr.rel (0) target = $region25
  $region24: #{_lambda_.1} parent=0 // pred_region
    _
  $region25: #{_lambda_.1} parent=0 // pred_fallthru
    _
  // Predicated region
  $region26: #{_lambda_.1} parent=0 // pred_check
    _
  $region27: #{_lambda_.1} parent=0 // pred_check_branch
    %27 = sbr.rel (0) target = $region29
  $region28: #{_lambda_.1} parent=0 // pred_region
    _
  $region29: #{_lambda_.1} parent=0 // pred_fallthru
    _
  %v28 = vld [vmem:[%s0] sm:$0xff]
  %v29 = vld [vmem:[%s0 + $0x8] sm:$0xf]
  %v30 = vld [vmem:[%s1] sm:$0xff]
  %v31 = vld [vmem:[%s1 + $0x8] sm:$0xff]
  %v32 = vld [vmem:[%s1 + $0x10] sm:$0xff]
  %v33 = vld [vmem:[%s1 + $0x18] sm:$0xff]
  %v34 = vld [vmem:[%s2] sm:$0xff]
  %v35 = vld [vmem:[%s2 + $0x8] sm:$0xff]
  %v36 = vld [vmem:[%s2 + $0x10] sm:$0xff]
  %v37 = vld [vmem:[%s2 + $0x18] sm:$0xff]
  %vm38 = vcmask 97280
  %v40 = vsel %vm38, %v30, 0
  %v43 = vsel %vm38, %v31, 0
  %v46 = vsel %vm38, %v32, 0
  %v49 = vsel %vm38, %v33, 0
  %vm51 = vcmask 1043456
  %v53 = vsel %vm51, %v29, 0
  %55 = vmatprep.subr.mxu0 0.0
  %56 = vmatpush1.msra.mxu0 %v28
  %57 = vmatprep.subr.mxu0 0.0
  %58 = vmatpush1.msra.mxu0 %v53
  %59 = vmatprep.subr.mxu0 0.0
  %60 = vmatpush1.msra.mxu0 0.0
  %61 = vmatprep.subr.mxu0 0.0
  %62 = vmatpush1.msra.mxu0 0.0
  %63 = vmatprep.subr.mxu0 0.0
  %64 = vmatpush1.msra.mxu0 0.0
  %65 = vmatprep.subr.mxu0 0.0
  %66 = vmatpush1.msra.mxu0 0.0
  %67 = vmatprep.subr.mxu0 0.0
  %68 = vmatpush1.msra.mxu0 0.0
  %69 = vmatprep.subr.mxu0 0.0
  %70 = vmatpush1.msra.mxu0 0.0
  %71 = vmatprep.subr.mxu0 0.0
  %72 = vmatpush1.msra.mxu0 0.0
  %73 = vmatprep.subr.mxu0 0.0
  %74 = vmatpush1.msra.mxu0 0.0
  %75 = vmatprep.subr.mxu0 0.0
  %76 = vmatpush1.msra.mxu0 0.0
  %77 = vmatprep.subr.mxu0 0.0
  %78 = vmatpush1.msra.mxu0 0.0
  %79 = vmatprep.subr.mxu0 0.0
  %80 = vmatpush1.msra.mxu0 0.0
  %81 = vmatprep.subr.mxu0 0.0
  %82 = vmatpush1.msra.mxu0 0.0
  %83 = vmatprep.subr.mxu0 0.0
  %84 = vmatpush1.msra.mxu0 0.0
  %85 = vmatprep.subr.mxu0 0.0
  %86 = vmatpush1.msra.mxu0 0.0
  %87 = vmatprep.subr.mxu0 0.0
  %88 = vmatpush1.msra.mxu0 0.0
  %89 = vmatprep.subr.mxu0 0.0
  %90 = vmatpush1.msra.mxu0 0.0
  %91 = vmatprep.subr.mxu0 0.0
  %92 = vmatpush1.msra.mxu0 0.0
  %93 = vmatprep.subr.mxu0 0.0
  %94 = vmatpush1.msra.mxu0 0.0
  %95 = vmatprep.subr.mxu0 0.0
  %96 = vmatpush1.msra.mxu0 0.0
  %97 = vmatprep.subr.mxu0 0.0
  %98 = vmatpush1.msra.mxu0 0.0
  %99 = vmatprep.subr.mxu0 0.0
  %100 = vmatpush1.msra.mxu0 0.0
  %101 = vmatprep.subr.mxu0 0.0
  %102 = vmatpush1.msra.mxu0 0.0
  %103 = vmatprep.subr.mxu0 0.0
  %104 = vmatpush1.msra.mxu0 0.0
  %105 = vmatprep.subr.mxu0 0.0
  %106 = vmatpush1.msra.mxu0 0.0
  %107 = vmatprep.subr.mxu0 0.0
  %108 = vmatpush1.msra.mxu0 0.0
  %109 = vmatprep.subr.mxu0 0.0
  %110 = vmatpush1.msra.mxu0 0.0
  %111 = vmatprep.subr.mxu0 0.0
  %112 = vmatpush1.msra.mxu0 0.0
  %113 = vmatprep.subr.mxu0 0.0
  %114 = vmatpush1.msra.mxu0 0.0
  %115 = vmatprep.subr.mxu0 0.0
  %116 = vmatpush1.msra.mxu0 0.0
  %117 = vmatprep.subr.mxu0 0.0
  %118 = vmatpush1.msra.mxu0 0.0
  %119 = vmatprep.mubr.f32.mxu0 0.0
  %120 = vmatmul.mubr.f32.gmra.mrb[0].mxu0 %v40
  %v121 = vpop.f32.mrb[0].mxu0
  %v122 = vadd.f32 %v34, %v121
  %v123 = vpop.f32.mrb[0].mxu0
  %124 = vmatprep.mubr.f32.mxu0 0.0
  %125 = vmatmul.mubr.f32.gmra.mrb[0].mxu0 %v43
  %v126 = vpop.f32.mrb[0].mxu0
  %v127 = vadd.f32 %v35, %v126
  %v128 = vpop.f32.mrb[0].mxu0
  %129 = vmatprep.mubr.f32.mxu0 0.0
  %130 = vmatmul.mubr.f32.gmra.mrb[0].mxu0 %v46
  %v131 = vpop.f32.mrb[0].mxu0
  %v132 = vadd.f32 %v36, %v131
  %v133 = vpop.f32.mrb[0].mxu0
  %134 = vmatprep.mubr.f32.mxu0 0.0
  %135 = vmatmul.mubr.f32.gmra.mrb[0].mxu0 %v49
  %v136 = vpop.f32.mrb[0].mxu0
  %v137 = vadd.f32 %v37, %v136
  %v138 = vpop.f32.mrb[0].mxu0
  %139 = vdwg.mxu0
  %v140 = vmax.f32 %v122, 0.0
  %v141 = vmax.f32 %v127, 0.0
  %v142 = vmax.f32 %v132, 0.0
  %v143 = vmax.f32 %v137, 0.0
  %v144 = vld [vmem:[%s3] sm:$0xff]
  %v145 = vld [vmem:[%s3 + $0x8] sm:$0xff]
  %v146 = vld [vmem:[%s3 + $0x10] sm:$0xff]
  %v147 = vld [vmem:[%s3 + $0x18] sm:$0xff]
  %v148 = vld [vmem:[%s4] sm:$0xff]
  %v149 = vld [vmem:[%s4 + $0x8] sm:$0xff]
  %v150 = vld [vmem:[%s4 + $0x10] sm:$0xff]
  %v151 = vld [vmem:[%s4 + $0x18] sm:$0xff]
  %153 = vset.pattern.permute.xlu0 0
  %154 = vperm.xlu0 %153, %v148
  %v155 = vpop.permute.xlu0 %154
  %158 = vset.pattern.permute.xlu0 0
  %159 = vperm.xlu0 %158, %v149
  %v160 = vpop.permute.xlu0 %159
  %163 = vset.pattern.permute.xlu0 0
  %164 = vperm.xlu0 %163, %v150
  %v165 = vpop.permute.xlu0 %164
  %168 = vset.pattern.permute.xlu0 0
  %169 = vperm.xlu0 %168, %v151
  %v170 = vpop.permute.xlu0 %169
  %vm172 = vcmask 261120
  %v174 = vsel %vm172, %v144, 0
  %v177 = vsel %vm172, %v145, 0
  %v180 = vsel %vm172, %v146, 0
  %v183 = vsel %vm172, %v147, 0
  %185 = vmatprep.subr.mxu0 0.0
  %186 = vmatpush1.msra.mxu0 %v140
  %187 = vmatprep.subr.mxu0 0.0
  %188 = vmatpush1.msra.mxu0 %v141
  %189 = vmatprep.subr.mxu0 0.0
  %190 = vmatpush1.msra.mxu0 %v142
  %191 = vmatprep.subr.mxu0 0.0
  %192 = vmatpush1.msra.mxu0 %v143
  %193 = vmatprep.subr.mxu0 0.0
  %194 = vmatpush1.msra.mxu0 0.0
  %195 = vmatprep.subr.mxu0 0.0
  %196 = vmatpush1.msra.mxu0 0.0
  %197 = vmatprep.subr.mxu0 0.0
  %198 = vmatpush1.msra.mxu0 0.0
  %199 = vmatprep.subr.mxu0 0.0
  %200 = vmatpush1.msra.mxu0 0.0
  %201 = vmatprep.subr.mxu0 0.0
  %202 = vmatpush1.msra.mxu0 0.0
  %203 = vmatprep.subr.mxu0 0.0
  %204 = vmatpush1.msra.mxu0 0.0
  %205 = vmatprep.subr.mxu0 0.0
  %206 = vmatpush1.msra.mxu0 0.0
  %207 = vmatprep.subr.mxu0 0.0
  %208 = vmatpush1.msra.mxu0 0.0
  %209 = vmatprep.subr.mxu0 0.0
  %210 = vmatpush1.msra.mxu0 0.0
  %211 = vmatprep.subr.mxu0 0.0
  %212 = vmatpush1.msra.mxu0 0.0
  %213 = vmatprep.subr.mxu0 0.0
  %214 = vmatpush1.msra.mxu0 0.0
  %215 = vmatprep.subr.mxu0 0.0
  %216 = vmatpush1.msra.mxu0 0.0
  %217 = vmatprep.subr.mxu0 0.0
  %218 = vmatpush1.msra.mxu0 0.0
  %219 = vmatprep.subr.mxu0 0.0
  %220 = vmatpush1.msra.mxu0 0.0
  %221 = vmatprep.subr.mxu0 0.0
  %222 = vmatpush1.msra.mxu0 0.0
  %223 = vmatprep.subr.mxu0 0.0
  %224 = vmatpush1.msra.mxu0 0.0
  %225 = vmatprep.subr.mxu0 0.0
  %226 = vmatpush1.msra.mxu0 0.0
  %227 = vmatprep.subr.mxu0 0.0
  %228 = vmatpush1.msra.mxu0 0.0
  %229 = vmatprep.subr.mxu0 0.0
  %230 = vmatpush1.msra.mxu0 0.0
  %231 = vmatprep.subr.mxu0 0.0
  %232 = vmatpush1.msra.mxu0 0.0
  %233 = vmatprep.subr.mxu0 0.0
  %234 = vmatpush1.msra.mxu0 0.0
  %235 = vmatprep.subr.mxu0 0.0
  %236 = vmatpush1.msra.mxu0 0.0
  %237 = vmatprep.subr.mxu0 0.0
  %238 = vmatpush1.msra.mxu0 0.0
  %239 = vmatprep.subr.mxu0 0.0
  %240 = vmatpush1.msra.mxu0 0.0
  %241 = vmatprep.subr.mxu0 0.0
  %242 = vmatpush1.msra.mxu0 0.0
  %243 = vmatprep.subr.mxu0 0.0
  %244 = vmatpush1.msra.mxu0 0.0
  %245 = vmatprep.subr.mxu0 0.0
  %246 = vmatpush1.msra.mxu0 0.0
  %247 = vmatprep.subr.mxu0 0.0
  %248 = vmatpush1.msra.mxu0 0.0
  %249 = vmatprep.mubr.f32.mxu0 0.0
  %250 = vmatmul.mubr.f32.gmra.mrb[0].mxu0 %v174
  %v251 = vpop.f32.mrb[0].mxu0
  %v252 = vadd.f32 %v155, %v251
  %v253 = vpop.f32.mrb[0].mxu0
  %254 = vmatprep.mubr.f32.mxu0 0.0
  %255 = vmatmul.mubr.f32.gmra.mrb[0].mxu0 %v177
  %v256 = vpop.f32.mrb[0].mxu0
  %v257 = vadd.f32 %v160, %v256
  %v258 = vpop.f32.mrb[0].mxu0
  %259 = vmatprep.mubr.f32.mxu0 0.0
  %260 = vmatmul.mubr.f32.gmra.mrb[0].mxu0 %v180
  %v261 = vpop.f32.mrb[0].mxu0
  %v262 = vadd.f32 %v165, %v261
  %v263 = vpop.f32.mrb[0].mxu0
  %264 = vmatprep.mubr.f32.mxu0 0.0
  %265 = vmatmul.mubr.f32.gmra.mrb[0].mxu0 %v183
  %v266 = vpop.f32.mrb[0].mxu0
  %v267 = vadd.f32 %v170, %v266
  %v268 = vpop.f32.mrb[0].mxu0
  %269 = vdwg.mxu0
  %v270 = vmax.f32 %v252, 0.0
  %v271 = vmax.f32 %v257, 0.0
  %v272 = vmax.f32 %v262, 0.0
  %v273 = vmax.f32 %v267, 0.0
  %v274 = vld [vmem:[%s5] sm:$0x1]
  %v275 = vld [vmem:[#allocation2] sm:$0x1]
  %277 = vset.pattern.permute.xlu0 0
  %278 = vperm.xlu0 %277, %v275
  %v279 = vpop.permute.xlu0 %278
  %v281 = vlaneseq
  %v282 = vshrl.u32 %v281, 7
  %v283 = vsub.s32 0, %v282
  %v284 = vrot.slane %v279, %v283
  %v286 = vsel %vm172, %v274, 0
  %288 = vmatprep.subr.mxu0 0.0
  %289 = vmatpush1.msra.mxu0 %v270
  %290 = vmatprep.subr.mxu0 0.0
  %291 = vmatpush1.msra.mxu0 %v271
  %292 = vmatprep.subr.mxu0 0.0
  %293 = vmatpush1.msra.mxu0 %v272
  %294 = vmatprep.subr.mxu0 0.0
  %295 = vmatpush1.msra.mxu0 %v273
  %296 = vmatprep.subr.mxu0 0.0
  %297 = vmatpush1.msra.mxu0 0.0
  %298 = vmatprep.subr.mxu0 0.0
  %299 = vmatpush1.msra.mxu0 0.0
  %300 = vmatprep.subr.mxu0 0.0
  %301 = vmatpush1.msra.mxu0 0.0
  %302 = vmatprep.subr.mxu0 0.0
  %303 = vmatpush1.msra.mxu0 0.0
  %304 = vmatprep.subr.mxu0 0.0
  %305 = vmatpush1.msra.mxu0 0.0
  %306 = vmatprep.subr.mxu0 0.0
  %307 = vmatpush1.msra.mxu0 0.0
  %308 = vmatprep.subr.mxu0 0.0
  %309 = vmatpush1.msra.mxu0 0.0
  %310 = vmatprep.subr.mxu0 0.0
  %311 = vmatpush1.msra.mxu0 0.0
  %312 = vmatprep.subr.mxu0 0.0
  %313 = vmatpush1.msra.mxu0 0.0
  %314 = vmatprep.subr.mxu0 0.0
  %315 = vmatpush1.msra.mxu0 0.0
  %316 = vmatprep.subr.mxu0 0.0
  %317 = vmatpush1.msra.mxu0 0.0
  %318 = vmatprep.subr.mxu0 0.0
  %319 = vmatpush1.msra.mxu0 0.0
  %320 = vmatprep.subr.mxu0 0.0
  %321 = vmatpush1.msra.mxu0 0.0
  %322 = vmatprep.subr.mxu0 0.0
  %323 = vmatpush1.msra.mxu0 0.0
  %324 = vmatprep.subr.mxu0 0.0
  %325 = vmatpush1.msra.mxu0 0.0
  %326 = vmatprep.subr.mxu0 0.0
  %327 = vmatpush1.msra.mxu0 0.0
  %328 = vmatprep.subr.mxu0 0.0
  %329 = vmatpush1.msra.mxu0 0.0
  %330 = vmatprep.subr.mxu0 0.0
  %331 = vmatpush1.msra.mxu0 0.0
  %332 = vmatprep.subr.mxu0 0.0
  %333 = vmatpush1.msra.mxu0 0.0
  %334 = vmatprep.subr.mxu0 0.0
  %335 = vmatpush1.msra.mxu0 0.0
  %336 = vmatprep.subr.mxu0 0.0
  %337 = vmatpush1.msra.mxu0 0.0
  %338 = vmatprep.subr.mxu0 0.0
  %339 = vmatpush1.msra.mxu0 0.0
  %340 = vmatprep.subr.mxu0 0.0
  %341 = vmatpush1.msra.mxu0 0.0
  %342 = vmatprep.subr.mxu0 0.0
  %343 = vmatpush1.msra.mxu0 0.0
  %344 = vmatprep.subr.mxu0 0.0
  %345 = vmatpush1.msra.mxu0 0.0
  %346 = vmatprep.subr.mxu0 0.0
  %347 = vmatpush1.msra.mxu0 0.0
  %348 = vmatprep.subr.mxu0 0.0
  %349 = vmatpush1.msra.mxu0 0.0
  %350 = vmatprep.subr.mxu0 0.0
  %351 = vmatpush1.msra.mxu0 0.0
  %352 = vmatprep.mubr.f32.mxu0 0.0
  %353 = vmatmul.mubr.f32.gmra.mrb[0].mxu0 %v286
  %v354 = vpop.f32.mrb[0].mxu0
  %v355 = vadd.f32 %v284, %v354
  %v356 = vpop.f32.mrb[0].mxu0
  %357 = vdwg.mxu0
  %358 = vst [vmem:[%s7] sm:$0x1] %v355
  // Predicated region
  $region30: #{_lambda_.1} parent=0 // pred_check
    _
  $region31: #{_lambda_.1} parent=0 // pred_check_branch
    %360 = sbr.rel (0) target = $region33
  $region32: #{_lambda_.1} parent=0 // pred_region
    _
  $region33: #{_lambda_.1} parent=0 // pred_fallthru
    _
  // Predicated region
  $region34: #{_lambda_.1} parent=0 // pred_check
    _
  $region35: #{_lambda_.1} parent=0 // pred_check_branch
    %362 = sbr.rel (0) target = $region37
  $region36: #{_lambda_.1} parent=0 // pred_region
    _
  $region37: #{_lambda_.1} parent=0 // pred_fallthru
    _

</llo_original>
